<compile_context>
chip_gen: v6e
topology: v6e:2x2x1
jax: 0.10.0
libtpu: 0.0.40
codegen_flags: <defaults>
</compile_context>

<pallas_src>
import numpy as np
import jax
import jax.numpy as jnp
from jax import lax
from jax.experimental import pallas as pl
from jax.experimental.pallas import tpu as pltpu  # noqa: F401

# ---------------- model hyper-parameters (small, consistent with module) -----
BATCH = 2
INPUT_DIM = 8
HIDDEN_DIM = 32
SEQ_LEN = 8
P = 16                      # total tokens after mapping_A (seq_len + extra)
EXTRA = P - SEQ_LEN
NUM_HEADS = 2
HEAD_DIM = HIDDEN_DIM // NUM_HEADS
assert HEAD_DIM * NUM_HEADS == HIDDEN_DIM

ROWS = BATCH * SEQ_LEN      # 16 query rows (real tokens only)

# ---------------- packed-slab row layout (all bands 128 lanes wide) ----------
R_WT   = 0                            # (INPUT_DIM, H)       token_proj weight
R_BT   = 8                            # (1, H)               token_proj bias
R_BQKV = 9                            # (1, 3H)              fused qkv bias (Q pre-scaled)
R_BO   = 10                           # (1, 128)             out_proj bias (lane-padded)
R_MOD  = 16                           # (ROWS, H)            modulation tiled over batch
R_WQKV = 32                           # (H, 3H)              fused [Wq*s | Wk | Wv]
R_KVI  = 64                           # (EXTRA, 2H)          precomputed interp [K | V]
R_WO   = 72                           # (H, 128)             out_proj weight (lane-padded)
R_MASK = 104                          # (ROWS, ROWS)         block-diagonal batch mask
SLAB_ROWS = 120                       # multiple of 8


# ---------------- Pallas kernel ----------------------------------------------
def mha_extended_kernel(x_ref, slab_ref, out_ref):
    """x_ref: (ROWS, INPUT_DIM); slab_ref: (SLAB_ROWS, 128); out_ref: (ROWS, 128)."""
    H = HIDDEN_DIM
    f32 = jnp.float32
    contract = (((1,), (1,)), ((), ()))          # contract feature axes (no .T)

    # --- static views into the packed slab (free) ---
    wt   = slab_ref[R_WT:R_WT + INPUT_DIM, 0:H]          # (8, 32)
    bt   = slab_ref[R_BT:R_BT + 1, 0:H]                  # (1, 32)
    bqkv = slab_ref[R_BQKV:R_BQKV + 1, 0:3 * H]          # (1, 96)
    bo   = slab_ref[R_BO:R_BO + 1, :]                    # (1, 128) cols>=H are 0
    modm = slab_ref[R_MOD:R_MOD + ROWS, 0:H]             # (16, 32)
    wqkv = slab_ref[R_WQKV:R_WQKV + H, 0:3 * H]          # (32, 96)
    kvi  = slab_ref[R_KVI:R_KVI + EXTRA, 0:2 * H]        # (8, 64)  interp [K|V]
    mask = slab_ref[R_MASK:R_MASK + ROWS, 0:ROWS]        # (16, 16) 0 / -1e30

    # --- ExtendedMappingA: token projection + modulation (both batches fused) ---
    tok = jnp.dot(x_ref[...], wt, preferred_element_type=f32) + bt
    tok = tok * modm                                      # (16, 32)

    # --- fused Q/K/V projection (Q columns pre-scaled by 1/sqrt(Dh)) ---
    qkv = jnp.dot(tok, wqkv, preferred_element_type=f32) + bqkv   # (16, 96)

    # --- per-head attention; interp block computed once and shared per batch ---
    acc = jnp.zeros((ROWS, 128), f32)
    for h in range(NUM_HEADS):                            # static unroll
        lo = h * HEAD_DIM
        qh  = qkv[:, lo:lo + HEAD_DIM]                    # (16, 16) scaled queries
        khr = qkv[:, H + lo:H + lo + HEAD_DIM]            # (16, 16) real-token K
        vhr = qkv[:, 2 * H + lo:2 * H + lo + HEAD_DIM]    # (16, 16) real-token V
        khi = kvi[:, lo:lo + HEAD_DIM]                    # (8, 16)  interp K (shared)
        vhi = kvi[:, H + lo:H + lo + HEAD_DIM]            # (8, 16)  interp V (shared)

        # real-token scores with block-diagonal batch mask (applied before exp)
        s_r = lax.dot_general(qh, khr, contract, preferred_element_type=f32) + mask
        # interp-token scores: batch-invariant, computed once for both batches
        s_i = lax.dot_general(qh, khi, contract, preferred_element_type=f32)

        m = jnp.maximum(jnp.max(s_r, axis=-1, keepdims=True),
                        jnp.max(s_i, axis=-1, keepdims=True))      # (16, 1)
        e_r = jnp.exp(s_r - m)                                      # masked -> exactly 0
        e_i = jnp.exp(s_i - m)
        denom = (jnp.sum(e_r, axis=-1, keepdims=True) +
                 jnp.sum(e_i, axis=-1, keepdims=True))              # (16, 1)
        pv = (jnp.dot(e_r, vhr, preferred_element_type=f32) +
              jnp.dot(e_i, vhi, preferred_element_type=f32))        # (16, 16)
        head_out = pv * (1.0 / denom)                               # exact reciprocal

        # output projection accumulated per head (no lane-axis concat)
        wo_h = slab_ref[R_WO + lo:R_WO + lo + HEAD_DIM, :]          # (16, 128)
        acc = acc + jnp.dot(head_out, wo_h, preferred_element_type=f32)

    out_ref[...] = (acc + bo).astype(out_ref.dtype)                 # lane-dense store


# ---------------- one-time parameter packing (out of the per-call path) ------
def pack_params(params):
    (wt, bt, mod, interp, wq, bq, wk, bk, wv, bv, wo, bo) = params
    H = HIDDEN_DIM
    f32 = jnp.float32
    scale = 1.0 / (HEAD_DIM ** 0.5)                      # 0.25, exact power of 2

    w_qkv = jnp.concatenate([wq * scale, wk, wv], axis=1)            # (H, 3H)
    b_qkv = jnp.concatenate([bq * scale, bk, bv], axis=1)            # (1, 3H)

    # batch-invariant interp-token K|V (do not depend on x)
    w_kv = jnp.concatenate([wk, wv], axis=1)                         # (H, 2H)
    b_kv = jnp.concatenate([bk, bv], axis=1)                         # (1, 2H)
    kv_interp = interp @ w_kv + b_kv                                 # (EXTRA, 2H)

    mod_tiled = jnp.tile(mod, (BATCH, 1))                            # (ROWS, H)

    # compile-time block-diagonal batch mask (query batch == key batch)
    qb = np.arange(ROWS)[:, None] // SEQ_LEN
    kb = np.arange(ROWS)[None, :] // SEQ_LEN
    mask = np.where(qb == kb, 0.0, -1e30).astype(np.float32)         # (ROWS, ROWS)

    slab = jnp.zeros((SLAB_ROWS, 128), f32)
    slab = slab.at[R_WT:R_WT + INPUT_DIM, 0:H].set(wt)
    slab = slab.at[R_BT, 0:H].set(bt[0])
    slab = slab.at[R_BQKV, 0:3 * H].set(b_qkv[0])
    slab = slab.at[R_BO, 0:H].set(bo[0])                  # lanes >= H stay zero
    slab = slab.at[R_MOD:R_MOD + ROWS, 0:H].set(mod_tiled)
    slab = slab.at[R_WQKV:R_WQKV + H, 0:3 * H].set(w_qkv)
    slab = slab.at[R_KVI:R_KVI + EXTRA, 0:2 * H].set(kv_interp)
    slab = slab.at[R_WO:R_WO + H, 0:H].set(wo)            # lanes >= H stay zero
    slab = slab.at[R_MASK:R_MASK + ROWS, 0:ROWS].set(jnp.asarray(mask))
    return slab


# ---------------- wrapper (per-call path: reshape -> kernel -> slice) ---------
def mha_extended_forward(x, slab):
    """x: (B, S, D_in) float32, slab: packed params -> (B, S, H) float32."""
    B, S, DIN = x.shape
    x_flat = x.reshape(B * S, DIN)

    full = lambda shape: pl.BlockSpec(shape, lambda: (0,) * len(shape))
    out_pad = pl.pallas_call(
        mha_extended_kernel,
        out_shape=jax.ShapeDtypeStruct((B * S, 128), jnp.float32),
        in_specs=[full((B * S, DIN)), full((SLAB_ROWS, 128))],
        out_specs=full((B * S, 128)),
    )(x_flat, slab)

    return out_pad[:, :HIDDEN_DIM].reshape(B, S, HIDDEN_DIM)


# ---------------- pure-JAX reference (for correctness check) -----------------
def reference_forward(x, params):
    (wt, bt, mod, interp, wq, bq, wk, bk, wv, bv, wo, bo) = params
    B = x.shape[0]
    tok = x @ wt + bt                                  # (B, S, H)
    tok = tok * mod[None]
    interp_b = jnp.broadcast_to(interp[None], (B, EXTRA, HIDDEN_DIM))
    xm = jnp.concatenate([tok, interp_b], axis=1)      # (B, P, H)

    q = xm @ wq + bq
    k = xm @ wk + bk
    v = xm @ wv + bv

    def split(t):  # (B, P, H) -> (B, heads, P, Dh)
        return t.reshape(B, P, NUM_HEADS, HEAD_DIM).transpose(0, 2, 1, 3)

    qh, kh, vh = split(q), split(k), split(v)
    scores = jnp.einsum("bhqd,bhkd->bhqk", qh, kh) / (HEAD_DIM ** 0.5)
    w = jax.nn.softmax(scores, axis=-1)
    ao = jnp.einsum("bhqk,bhkd->bhqd", w, vh)
    ao = ao.transpose(0, 2, 1, 3).reshape(B, P, HIDDEN_DIM)
    out = ao @ wo + bo
    return out[:, :SEQ_LEN, :]


# ---------------- deterministic parameter init --------------------------------
def init_params(key):
    ks = jax.random.split(key, 10)
    f32 = jnp.float32
    wt = 0.1 * jax.random.normal(ks[0], (INPUT_DIM, HIDDEN_DIM), f32)
    bt = 0.1 * jax.random.normal(ks[1], (1, HIDDEN_DIM), f32)
    mod = jnp.ones((SEQ_LEN, HIDDEN_DIM), f32)                    # nn.Parameter(ones)
    interp = jnp.broadcast_to(
        jnp.linspace(-1.0, 1.0, EXTRA, dtype=f32)[:, None],
        (EXTRA, HIDDEN_DIM)).copy()                               # linspace expand
    wq = 0.1 * jax.random.normal(ks[2], (HIDDEN_DIM, HIDDEN_DIM), f32)
    bq = 0.1 * jax.random.normal(ks[3], (1, HIDDEN_DIM), f32)
    wk = 0.1 * jax.random.normal(ks[4], (HIDDEN_DIM, HIDDEN_DIM), f32)
    bk = 0.1 * jax.random.normal(ks[5], (1, HIDDEN_DIM), f32)
    wv = 0.1 * jax.random.normal(ks[6], (HIDDEN_DIM, HIDDEN_DIM), f32)
    bv = 0.1 * jax.random.normal(ks[7], (1, HIDDEN_DIM), f32)
    wo = 0.1 * jax.random.normal(ks[8], (HIDDEN_DIM, HIDDEN_DIM), f32)
    bo = 0.1 * jax.random.normal(ks[9], (1, HIDDEN_DIM), f32)
    return (wt, bt, mod, interp, wq, bq, wk, bk, wv, bv, wo, bo)


if __name__ == "__main__":
    key = jax.random.PRNGKey(0)
    pkey, xkey = jax.random.split(key)
    params = init_params(pkey)

    # one-time packing, hoisted out of the per-call path
    slab = jax.block_until_ready(pack_params(params))

    x = jax.random.normal(xkey, (BATCH, SEQ_LEN, INPUT_DIM), jnp.float32)

    out = mha_extended_forward(x, slab)
    out = jax.block_until_ready(out)

    ref = reference_forward(x, params)
    assert out.shape == (BATCH, SEQ_LEN, HIDDEN_DIM)
    assert jnp.allclose(out, ref, atol=1e-5, rtol=1e-5), "mismatch vs JAX reference"
    print("KERNEL_OK")
</pallas_src>

<mosaic_0001>
module attributes {stable_mosaic.version = 11 : i64} {
  func.func @mha_extended_kernel(%arg0: memref<16x8xf32, #tpu.memory_space<vmem>>, %arg1: memref<120x128xf32, #tpu.memory_space<vmem>>, %arg2: memref<16x128xf32, #tpu.memory_space<vmem>>) attributes {dimension_semantics = [], scalar_prefetch = 0 : i64, scratch_operands = 0 : i64, tpu.core_type = #tpu.core_type<tc>} {
    %c0 = arith.constant 0 : index
    %c0_0 = arith.constant 0 : index
    %0 = vector.load %arg1[%c0, %c0_0] : memref<120x128xf32, #tpu.memory_space<vmem>>, vector<8x32xf32>
    %c8 = arith.constant 8 : index
    %c0_1 = arith.constant 0 : index
    %1 = vector.load %arg1[%c8, %c0_1] : memref<120x128xf32, #tpu.memory_space<vmem>>, vector<1x32xf32>
    %c9 = arith.constant 9 : index
    %c0_2 = arith.constant 0 : index
    %2 = vector.load %arg1[%c9, %c0_2] : memref<120x128xf32, #tpu.memory_space<vmem>>, vector<1x96xf32>
    %c10 = arith.constant 10 : index
    %c0_3 = arith.constant 0 : index
    %3 = vector.load %arg1[%c10, %c0_3] : memref<120x128xf32, #tpu.memory_space<vmem>>, vector<1x128xf32>
    %c16 = arith.constant 16 : index
    %c0_4 = arith.constant 0 : index
    %4 = vector.load %arg1[%c16, %c0_4] : memref<120x128xf32, #tpu.memory_space<vmem>>, vector<16x32xf32>
    %c32 = arith.constant 32 : index
    %c0_5 = arith.constant 0 : index
    %5 = vector.load %arg1[%c32, %c0_5] : memref<120x128xf32, #tpu.memory_space<vmem>>, vector<32x96xf32>
    %c64 = arith.constant 64 : index
    %c0_6 = arith.constant 0 : index
    %6 = vector.load %arg1[%c64, %c0_6] : memref<120x128xf32, #tpu.memory_space<vmem>>, vector<8x64xf32>
    %c104 = arith.constant 104 : index
    %c0_7 = arith.constant 0 : index
    %7 = vector.load %arg1[%c104, %c0_7] : memref<120x128xf32, #tpu.memory_space<vmem>>, vector<16x16xf32>
    %c0_8 = arith.constant 0 : index
    %c0_9 = arith.constant 0 : index
    %8 = vector.load %arg0[%c0_8, %c0_9] : memref<16x8xf32, #tpu.memory_space<vmem>>, vector<16x8xf32>
    %cst = arith.constant dense<0.000000e+00> : vector<16x32xf32>
    %9 = tpu.matmul %8, %0, %cst {dimension_numbers = #tpu.dot_dimension_numbers<[1], [0], [0], [1], [0, 0, 1, 1], [], []>} : vector<16x8xf32>, vector<8x32xf32>, vector<16x32xf32> -> vector<16x32xf32>
    %10 = vector.broadcast %1 : vector<1x32xf32> to vector<16x32xf32>
    %11 = arith.addf %9, %10 : vector<16x32xf32>
    %12 = arith.mulf %11, %4 : vector<16x32xf32>
    %cst_10 = arith.constant dense<0.000000e+00> : vector<16x96xf32>
    %13 = tpu.matmul %12, %5, %cst_10 {dimension_numbers = #tpu.dot_dimension_numbers<[1], [0], [0], [1], [0, 0, 1, 1], [], []>} : vector<16x32xf32>, vector<32x96xf32>, vector<16x96xf32> -> vector<16x96xf32>
    %14 = vector.broadcast %2 : vector<1x96xf32> to vector<16x96xf32>
    %15 = arith.addf %13, %14 : vector<16x96xf32>
    %cst_11 = arith.constant 0.000000e+00 : f32
    %16 = vector.broadcast %cst_11 : f32 to vector<16x128xf32>
    %17 = vector.extract_strided_slice %15 {offsets = [0, 0], sizes = [16, 16], strides = [1, 1]} : vector<16x96xf32> to vector<16x16xf32>
    %18 = vector.extract_strided_slice %15 {offsets = [0, 32], sizes = [16, 16], strides = [1, 1]} : vector<16x96xf32> to vector<16x16xf32>
    %19 = vector.extract_strided_slice %15 {offsets = [0, 64], sizes = [16, 16], strides = [1, 1]} : vector<16x96xf32> to vector<16x16xf32>
    %20 = vector.extract_strided_slice %6 {offsets = [0, 0], sizes = [8, 16], strides = [1, 1]} : vector<8x64xf32> to vector<8x16xf32>
    %21 = vector.extract_strided_slice %6 {offsets = [0, 32], sizes = [8, 16], strides = [1, 1]} : vector<8x64xf32> to vector<8x16xf32>
    %cst_12 = arith.constant dense<0.000000e+00> : vector<16x16xf32>
    %22 = tpu.matmul %17, %18, %cst_12 {dimension_numbers = #tpu.dot_dimension_numbers<[1], [1], [0], [0], [0, 0, 1, 0], [], []>} : vector<16x16xf32>, vector<16x16xf32>, vector<16x16xf32> -> vector<16x16xf32>
    %23 = arith.addf %22, %7 : vector<16x16xf32>
    %cst_13 = arith.constant dense<0.000000e+00> : vector<16x8xf32>
    %24 = tpu.matmul %17, %20, %cst_13 {dimension_numbers = #tpu.dot_dimension_numbers<[1], [1], [0], [0], [0, 0, 1, 0], [], []>} : vector<16x16xf32>, vector<8x16xf32>, vector<16x8xf32> -> vector<16x8xf32>
    %cst_14 = arith.constant dense<0xFF800000> : vector<16xf32>
    %25 = vector.multi_reduction <maximumf>, %23, %cst_14 [1] : vector<16x16xf32> to vector<16xf32>
    %26 = vector.shape_cast %25 : vector<16xf32> to vector<16x1xf32>
    %cst_15 = arith.constant dense<0xFF800000> : vector<16xf32>
    %27 = vector.multi_reduction <maximumf>, %24, %cst_15 [1] : vector<16x8xf32> to vector<16xf32>
    %28 = vector.shape_cast %27 : vector<16xf32> to vector<16x1xf32>
    %29 = arith.maximumf %26, %28 : vector<16x1xf32>
    %30 = vector.broadcast %29 : vector<16x1xf32> to vector<16x16xf32>
    %31 = arith.subf %23, %30 : vector<16x16xf32>
    %32 = math.exp %31 : vector<16x16xf32>
    %33 = vector.broadcast %29 : vector<16x1xf32> to vector<16x8xf32>
    %34 = arith.subf %24, %33 : vector<16x8xf32>
    %35 = math.exp %34 : vector<16x8xf32>
    %cst_16 = arith.constant dense<0.000000e+00> : vector<16xf32>
    %36 = vector.multi_reduction <add>, %32, %cst_16 [1] : vector<16x16xf32> to vector<16xf32>
    %37 = vector.shape_cast %36 : vector<16xf32> to vector<16x1xf32>
    %cst_17 = arith.constant dense<0.000000e+00> : vector<16xf32>
    %38 = vector.multi_reduction <add>, %35, %cst_17 [1] : vector<16x8xf32> to vector<16xf32>
    %39 = vector.shape_cast %38 : vector<16xf32> to vector<16x1xf32>
    %40 = arith.addf %37, %39 : vector<16x1xf32>
    %cst_18 = arith.constant dense<0.000000e+00> : vector<16x16xf32>
    %41 = tpu.matmul %32, %19, %cst_18 {dimension_numbers = #tpu.dot_dimension_numbers<[1], [0], [0], [1], [0, 0, 1, 1], [], []>} : vector<16x16xf32>, vector<16x16xf32>, vector<16x16xf32> -> vector<16x16xf32>
    %cst_19 = arith.constant dense<0.000000e+00> : vector<16x16xf32>
    %42 = tpu.matmul %35, %21, %cst_19 {dimension_numbers = #tpu.dot_dimension_numbers<[1], [0], [0], [1], [0, 0, 1, 1], [], []>} : vector<16x8xf32>, vector<8x16xf32>, vector<16x16xf32> -> vector<16x16xf32>
    %43 = arith.addf %41, %42 : vector<16x16xf32>
    %cst_20 = arith.constant 1.000000e+00 : f32
    %44 = vector.broadcast %cst_20 : f32 to vector<16x1xf32>
    %45 = arith.divf %44, %40 : vector<16x1xf32>
    %46 = vector.broadcast %45 : vector<16x1xf32> to vector<16x16xf32>
    %47 = arith.mulf %43, %46 : vector<16x16xf32>
    %c72 = arith.constant 72 : index
    %c0_21 = arith.constant 0 : index
    %48 = vector.load %arg1[%c72, %c0_21] : memref<120x128xf32, #tpu.memory_space<vmem>>, vector<16x128xf32>
    %cst_22 = arith.constant dense<0.000000e+00> : vector<16x128xf32>
    %49 = tpu.matmul %47, %48, %cst_22 {dimension_numbers = #tpu.dot_dimension_numbers<[1], [0], [0], [1], [0, 0, 1, 1], [], []>} : vector<16x16xf32>, vector<16x128xf32>, vector<16x128xf32> -> vector<16x128xf32>
    %50 = arith.addf %16, %49 : vector<16x128xf32>
    %51 = vector.extract_strided_slice %15 {offsets = [0, 16], sizes = [16, 16], strides = [1, 1]} : vector<16x96xf32> to vector<16x16xf32>
    %52 = vector.extract_strided_slice %15 {offsets = [0, 48], sizes = [16, 16], strides = [1, 1]} : vector<16x96xf32> to vector<16x16xf32>
    %53 = vector.extract_strided_slice %15 {offsets = [0, 80], sizes = [16, 16], strides = [1, 1]} : vector<16x96xf32> to vector<16x16xf32>
    %54 = vector.extract_strided_slice %6 {offsets = [0, 16], sizes = [8, 16], strides = [1, 1]} : vector<8x64xf32> to vector<8x16xf32>
    %55 = vector.extract_strided_slice %6 {offsets = [0, 48], sizes = [8, 16], strides = [1, 1]} : vector<8x64xf32> to vector<8x16xf32>
    %cst_23 = arith.constant dense<0.000000e+00> : vector<16x16xf32>
    %56 = tpu.matmul %51, %52, %cst_23 {dimension_numbers = #tpu.dot_dimension_numbers<[1], [1], [0], [0], [0, 0, 1, 0], [], []>} : vector<16x16xf32>, vector<16x16xf32>, vector<16x16xf32> -> vector<16x16xf32>
    %57 = arith.addf %56, %7 : vector<16x16xf32>
    %cst_24 = arith.constant dense<0.000000e+00> : vector<16x8xf32>
    %58 = tpu.matmul %51, %54, %cst_24 {dimension_numbers = #tpu.dot_dimension_numbers<[1], [1], [0], [0], [0, 0, 1, 0], [], []>} : vector<16x16xf32>, vector<8x16xf32>, vector<16x8xf32> -> vector<16x8xf32>
    %cst_25 = arith.constant dense<0xFF800000> : vector<16xf32>
    %59 = vector.multi_reduction <maximumf>, %57, %cst_25 [1] : vector<16x16xf32> to vector<16xf32>
    %60 = vector.shape_cast %59 : vector<16xf32> to vector<16x1xf32>
    %cst_26 = arith.constant dense<0xFF800000> : vector<16xf32>
    %61 = vector.multi_reduction <maximumf>, %58, %cst_26 [1] : vector<16x8xf32> to vector<16xf32>
    %62 = vector.shape_cast %61 : vector<16xf32> to vector<16x1xf32>
    %63 = arith.maximumf %60, %62 : vector<16x1xf32>
    %64 = vector.broadcast %63 : vector<16x1xf32> to vector<16x16xf32>
    %65 = arith.subf %57, %64 : vector<16x16xf32>
    %66 = math.exp %65 : vector<16x16xf32>
    %67 = vector.broadcast %63 : vector<16x1xf32> to vector<16x8xf32>
    %68 = arith.subf %58, %67 : vector<16x8xf32>
    %69 = math.exp %68 : vector<16x8xf32>
    %cst_27 = arith.constant dense<0.000000e+00> : vector<16xf32>
    %70 = vector.multi_reduction <add>, %66, %cst_27 [1] : vector<16x16xf32> to vector<16xf32>
    %71 = vector.shape_cast %70 : vector<16xf32> to vector<16x1xf32>
    %cst_28 = arith.constant dense<0.000000e+00> : vector<16xf32>
    %72 = vector.multi_reduction <add>, %69, %cst_28 [1] : vector<16x8xf32> to vector<16xf32>
    %73 = vector.shape_cast %72 : vector<16xf32> to vector<16x1xf32>
    %74 = arith.addf %71, %73 : vector<16x1xf32>
    %cst_29 = arith.constant dense<0.000000e+00> : vector<16x16xf32>
    %75 = tpu.matmul %66, %53, %cst_29 {dimension_numbers = #tpu.dot_dimension_numbers<[1], [0], [0], [1], [0, 0, 1, 1], [], []>} : vector<16x16xf32>, vector<16x16xf32>, vector<16x16xf32> -> vector<16x16xf32>
    %cst_30 = arith.constant dense<0.000000e+00> : vector<16x16xf32>
    %76 = tpu.matmul %69, %55, %cst_30 {dimension_numbers = #tpu.dot_dimension_numbers<[1], [0], [0], [1], [0, 0, 1, 1], [], []>} : vector<16x8xf32>, vector<8x16xf32>, vector<16x16xf32> -> vector<16x16xf32>
    %77 = arith.addf %75, %76 : vector<16x16xf32>
    %cst_31 = arith.constant 1.000000e+00 : f32
    %78 = vector.broadcast %cst_31 : f32 to vector<16x1xf32>
    %79 = arith.divf %78, %74 : vector<16x1xf32>
    %80 = vector.broadcast %79 : vector<16x1xf32> to vector<16x16xf32>
    %81 = arith.mulf %77, %80 : vector<16x16xf32>
    %c88 = arith.constant 88 : index
    %c0_32 = arith.constant 0 : index
    %82 = vector.load %arg1[%c88, %c0_32] : memref<120x128xf32, #tpu.memory_space<vmem>>, vector<16x128xf32>
    %cst_33 = arith.constant dense<0.000000e+00> : vector<16x128xf32>
    %83 = tpu.matmul %81, %82, %cst_33 {dimension_numbers = #tpu.dot_dimension_numbers<[1], [0], [0], [1], [0, 0, 1, 1], [], []>} : vector<16x16xf32>, vector<16x128xf32>, vector<16x128xf32> -> vector<16x128xf32>
    %84 = arith.addf %50, %83 : vector<16x128xf32>
    %85 = vector.broadcast %3 : vector<1x128xf32> to vector<16x128xf32>
    %86 = arith.addf %84, %85 : vector<16x128xf32>
    %c0_34 = arith.constant 0 : index
    %c0_35 = arith.constant 0 : index
    %87 = vector.load %arg2[%c0_34, %c0_35] : memref<16x128xf32, #tpu.memory_space<vmem>>, vector<16x128xf32>
    tpu.vector_store %arg2[%c0_34, %c0_35], %86 {strides = array<i32>} : memref<16x128xf32, #tpu.memory_space<vmem>>, vector<16x128xf32>,
    return
  }
}

</mosaic_0001>

<llo_original>
// kernel: tpu_custom_call.1
$region0: #{tpu_custom_call.1}
  #allocation0 [shape = 'u32[]', space=smem, size = 0x4, offset = 0x4, fixed_abs, tag = 'smem constant byte address 0x4 - core index']
  #allocation1 [shape = 'u32[144,128]{1,0:T(1,128)}', space=vmem, size = 0x12000, scoped, tag = 'internal scratch']
  %s0 = inlined_call_operand.vmem [shape: f32[16,8], index: 0, kind: input, shape index: {}]
  %s1 = inlined_call_operand.hbm [shape: f32[120,128], index: 1, kind: input, shape index: {}]
  %s2 = inlined_call_operand.hbm [shape: f32[16,128], index: 2, kind: output, shape index: {}]
  %s3 = sld [smem:[#allocation0]]
  $region22: #{tpu_custom_call.1} parent=0
    _
  %s5 = ssub.s32 1, %s3
  %s6 = scalar_select 0, %s5, %s3
  $region1: #{tpu_custom_call.1} parent=0
    #allocation2 [shape = 'u8[61440]{0}', space=vmem, size = 0xf000, scoped, tag = 'input window, operand 1, single buffered']
    #allocation3 [shape = 's32[1]{0}', space=sflag, size = 0x4, scoped, tag = 'scoped memory for tpu_custom_call.1']
    #allocation4 [shape = 's32[1]{0}', space=sflag, size = 0x4, scoped, tag = 'scoped memory for tpu_custom_call.1']
    #allocation5 [shape = 'u8[8192]{0}', space=vmem, size = 0x2000, scoped, tag = 'output window, operand 0, single buffered']
    %7 = vsyncpa [#allocation3], 0
    %8 = vsyncpa [#allocation4], 0
    // Predicated region
    $region2: #{tpu_custom_call.1} parent=1 // pred_check
      _
    $region3: #{tpu_custom_call.1} parent=1 // pred_check_branch
      %10 = sbr.rel (0) target = $region5
    $region4: #{tpu_custom_call.1} parent=1 // pred_region
      _
    $region5: #{tpu_custom_call.1} parent=1 // pred_fallthru
      _
    // Predicated region
    $region6: #{tpu_custom_call.1} parent=1 // pred_check
      _
    $region7: #{tpu_custom_call.1} parent=1 // pred_check_branch
      %12 = sbr.rel (0) target = $region9
    $region8: #{tpu_custom_call.1} parent=1 // pred_region
      %s14 = ssub.s32 1920, 1920
      %15 = vsyncadd [#allocation3], %s14
      %s16 = sshll.u32 [#allocation2], 4
      %s17 = int_to_ptr.vmem [resolvable:$true] %s16
      %22 = dma.hbm_to_vmem [thread:$0]  %s1, 1920, %s17, [#allocation3], 128, 128, 8
    $region9: #{tpu_custom_call.1} parent=1 // pred_fallthru
      _
    // Predicated region
    $region10: #{tpu_custom_call.1} parent=1 // pred_check
      _
    $region11: #{tpu_custom_call.1} parent=1 // pred_check_branch
      %24 = sbr.rel (0) target = $region13
    $region12: #{tpu_custom_call.1} parent=1 // pred_region
      %25 = dma.done [#allocation3], 1920
    $region13: #{tpu_custom_call.1} parent=1 // pred_fallthru
      _
    %v26 = vld [vmem:[#allocation2] sm:$0xff]
    %v27 = vld [vmem:[#allocation2 + $0x8] sm:$0x1]
    %v28 = vld [vmem:[#allocation2 + $0x9] sm:$0x1]
    %v29 = vld [vmem:[#allocation2 + $0xa] sm:$0x1]
    %v30 = vld [vmem:[#allocation2 + $0x10] sm:$0xff]
    %v31 = vld [vmem:[#allocation2 + $0x18] sm:$0xff]
    %v32 = vld [vmem:[#allocation2 + $0x20] sm:$0xff]
    %v33 = vld [vmem:[#allocation2 + $0x28] sm:$0xff]
    %v34 = vld [vmem:[#allocation2 + $0x30] sm:$0xff]
    %v35 = vld [vmem:[#allocation2 + $0x38] sm:$0xff]
    %v36 = vld [vmem:[#allocation2 + $0x40] sm:$0xff]
    %v37 = vld [vmem:[#allocation2 + $0x68] sm:$0xff]
    %v38 = vld [vmem:[#allocation2 + $0x70] sm:$0xff]
    %v39 = vld [vmem:[%s0] sm:$0xff]
    %v40 = vld [vmem:[%s0 + $0x8] sm:$0xff]
    %v41 = vlaneseq
    %v42 = vshrl.u32 %v41, 7
    %v43 = vsub.s32 0, %v42
    %v44 = vrot.slane %v27, %v43
    %vm45 = vcmask 64512
    %v47 = vsel %vm45, %v39, 0
    %v50 = vsel %vm45, %v40, 0
    %52 = vmatprep.subr.mxu0 0.0
    %53 = vmatpush1.msra.mxu0 0.0
    %54 = vmatprep.subr.mxu0 0.0
    %55 = vmatpush1.msra.mxu0 0.0
    %56 = vmatprep.subr.mxu0 0.0
    %57 = vmatpush1.msra.mxu0 0.0
    %58 = vmatprep.subr.mxu0 0.0
    %59 = vmatpush1.msra.mxu0 0.0
    %60 = vmatprep.subr.mxu0 0.0
    %61 = vmatpush1.msra.mxu0 0.0
    %62 = vmatprep.subr.mxu0 0.0
    %63 = vmatpush1.msra.mxu0 0.0
    %64 = vmatprep.subr.mxu0 0.0
    %65 = vmatpush1.msra.mxu0 0.0
    %66 = vmatprep.subr.mxu0 0.0
    %67 = vmatpush1.msra.mxu0 0.0
    %68 = vmatprep.subr.mxu0 0.0
    %69 = vmatpush1.msra.mxu0 0.0
    %70 = vmatprep.subr.mxu0 0.0
    %71 = vmatpush1.msra.mxu0 0.0
    %72 = vmatprep.subr.mxu0 0.0
    %73 = vmatpush1.msra.mxu0 0.0
    %74 = vmatprep.subr.mxu0 0.0
    %75 = vmatpush1.msra.mxu0 0.0
    %76 = vmatprep.subr.mxu0 0.0
    %77 = vmatpush1.msra.mxu0 0.0
    %78 = vmatprep.subr.mxu0 0.0
    %79 = vmatpush1.msra.mxu0 0.0
    %80 = vmatprep.subr.mxu0 0.0
    %81 = vmatpush1.msra.mxu0 0.0
    %82 = vmatprep.subr.mxu0 0.0
    %83 = vmatpush1.msra.mxu0 %v26
    %84 = vmatprep.subr.mxu0 0.0
    %85 = vmatpush2.msra.mxu0 0.0
    %86 = vmatprep.subr.mxu0 0.0
    %87 = vmatpush2.msra.mxu0 0.0
    %88 = vmatprep.subr.mxu0 0.0
    %89 = vmatpush2.msra.mxu0 0.0
    %90 = vmatprep.subr.mxu0 0.0
    %91 = vmatpush2.msra.mxu0 0.0
    %92 = vmatprep.subr.mxu0 0.0
    %93 = vmatpush2.msra.mxu0 0.0
    %94 = vmatprep.subr.mxu0 0.0
    %95 = vmatpush2.msra.mxu0 0.0
    %96 = vmatprep.subr.mxu0 0.0
    %97 = vmatpush2.msra.mxu0 0.0
    %98 = vmatprep.subr.mxu0 0.0
    %99 = vmatpush2.msra.mxu0 0.0
    %100 = vmatprep.subr.mxu0 0.0
    %101 = vmatpush2.msra.mxu0 0.0
    %102 = vmatprep.subr.mxu0 0.0
    %103 = vmatpush2.msra.mxu0 0.0
    %104 = vmatprep.subr.mxu0 0.0
    %105 = vmatpush2.msra.mxu0 0.0
    %106 = vmatprep.subr.mxu0 0.0
    %107 = vmatpush2.msra.mxu0 0.0
    %108 = vmatprep.subr.mxu0 0.0
    %109 = vmatpush2.msra.mxu0 0.0
    %110 = vmatprep.subr.mxu0 0.0
    %111 = vmatpush2.msra.mxu0 0.0
    %112 = vmatprep.subr.mxu0 0.0
    %113 = vmatpush2.msra.mxu0 0.0
    %114 = vmatprep.subr.mxu0 0.0
    %115 = vmatpush2.msra.mxu0 0.0
    %116 = vmatprep.mubr.f32.mxu0 0.0
    %117 = vmatmul.mubr.f32.gmra.mxu0 %v47
    %v118 = vpop.f32.mrf.mxu0
    %v119 = vadd.f32 %v44, %v118
    %v120 = vpop.f32.mrf.mxu0
    %121 = vmatprep.mubr.f32.mxu0 0.0
    %122 = vmatmul.mubr.f32.gmra.mxu0 %v50
    %v123 = vpop.f32.mrf.mxu0
    %v124 = vadd.f32 %v44, %v123
    %v125 = vpop.f32.mrf.mxu0
    %126 = vdwg.mxu0
    %v127 = vmul.f32 %v119, %v30
    %v128 = vmul.f32 %v124, %v31
    %v129 = vlaneseq
    %v130 = vshrl.u32 %v129, 7
    %v131 = vsub.s32 0, %v130
    %v132 = vrot.slane %v28, %v131
    %vm133 = vcmask 261120
    %v135 = vsel %vm133, %v127, 0
    %v138 = vsel %vm133, %v128, 0
    %140 = vmatprep.subr.mxu0 0.0
    %141 = vmatpush1.msra.mxu0 0.0
    %142 = vmatprep.subr.mxu0 0.0
    %143 = vmatpush1.msra.mxu0 0.0
    %144 = vmatprep.subr.mxu0 0.0
    %145 = vmatpush1.msra.mxu0 0.0
    %146 = vmatprep.subr.mxu0 0.0
    %147 = vmatpush1.msra.mxu0 0.0
    %148 = vmatprep.subr.mxu0 0.0
    %149 = vmatpush1.msra.mxu0 0.0
    %150 = vmatprep.subr.mxu0 0.0
    %151 = vmatpush1.msra.mxu0 0.0
    %152 = vmatprep.subr.mxu0 0.0
    %153 = vmatpush1.msra.mxu0 0.0
    %154 = vmatprep.subr.mxu0 0.0
    %155 = vmatpush1.msra.mxu0 0.0
    %156 = vmatprep.subr.mxu0 0.0
    %157 = vmatpush1.msra.mxu0 0.0
    %158 = vmatprep.subr.mxu0 0.0
    %159 = vmatpush1.msra.mxu0 0.0
    %160 = vmatprep.subr.mxu0 0.0
    %161 = vmatpush1.msra.mxu0 0.0
    %162 = vmatprep.subr.mxu0 0.0
    %163 = vmatpush1.msra.mxu0 0.0
    %164 = vmatprep.subr.mxu0 0.0
    %165 = vmatpush1.msra.mxu0 %v35
    %166 = vmatprep.subr.mxu0 0.0
    %167 = vmatpush1.msra.mxu0 %v34
    %168 = vmatprep.subr.mxu0 0.0
    %169 = vmatpush1.msra.mxu0 %v33
    %170 = vmatprep.subr.mxu0 0.0
    %171 = vmatpush1.msra.mxu0 %v32
    %172 = vmatprep.subr.mxu0 0.0
    %173 = vmatpush2.msra.mxu0 0.0
    %174 = vmatprep.subr.mxu0 0.0
    %175 = vmatpush2.msra.mxu0 0.0
    %176 = vmatprep.subr.mxu0 0.0
    %177 = vmatpush2.msra.mxu0 0.0
    %178 = vmatprep.subr.mxu0 0.0
    %179 = vmatpush2.msra.mxu0 0.0
    %180 = vmatprep.subr.mxu0 0.0
    %181 = vmatpush2.msra.mxu0 0.0
    %182 = vmatprep.subr.mxu0 0.0
    %183 = vmatpush2.msra.mxu0 0.0
    %184 = vmatprep.subr.mxu0 0.0
    %185 = vmatpush2.msra.mxu0 0.0
    %186 = vmatprep.subr.mxu0 0.0
    %187 = vmatpush2.msra.mxu0 0.0
    %188 = vmatprep.subr.mxu0 0.0
    %189 = vmatpush2.msra.mxu0 0.0
    %190 = vmatprep.subr.mxu0 0.0
    %191 = vmatpush2.msra.mxu0 0.0
    %192 = vmatprep.subr.mxu0 0.0
    %193 = vmatpush2.msra.mxu0 0.0
    %194 = vmatprep.subr.mxu0 0.0
    %195 = vmatpush2.msra.mxu0 0.0
    %196 = vmatprep.subr.mxu0 0.0
    %197 = vmatpush2.msra.mxu0 0.0
    %198 = vmatprep.subr.mxu0 0.0
    %199 = vmatpush2.msra.mxu0 0.0
    %200 = vmatprep.subr.mxu0 0.0
    %201 = vmatpush2.msra.mxu0 0.0
    %202 = vmatprep.subr.mxu0 0.0
    %203 = vmatpush2.msra.mxu0 0.0
    %204 = vmatprep.mubr.f32.mxu0 0.0
    %205 = vmatmul.mubr.f32.gmra.mxu0 %v135
    %v206 = vpop.f32.mrf.mxu0
    %v207 = vadd.f32 %v132, %v206
    %v208 = vpop.f32.mrf.mxu0
    %209 = vmatprep.mubr.f32.mxu0 0.0
    %210 = vmatmul.mubr.f32.gmra.mxu0 %v138
    %v211 = vpop.f32.mrf.mxu0
    %v212 = vadd.f32 %v132, %v211
    %v213 = vpop.f32.mrf.mxu0
    %214 = vdwg.mxu0
    %217 = vrot.lane.b32.xlu0 %v207, 96
    %v218 = vpop.permute.xlu0 %217
    %219 = vrot.lane.b32.xlu0 %v212, 96
    %v220 = vpop.permute.xlu0 %219
    %vm221 = vcmask 130048
    %v222 = vsel %vm221, %v207, 0
    %v224 = vsel %vm221, %v212, 0
    %v226 = vsel %vm221, %v218, 0
    %v228 = vsel %vm221, %v220, 0
    %230 = vmatprep.subr.mxu0 0.0
    %231 = vmatpush1.xpose.msra.mxu0 0.0
    %232 = vmatprep.subr.mxu0 0.0
    %233 = vmatpush1.xpose.msra.mxu0 0.0
    %234 = vmatprep.subr.mxu0 0.0
    %235 = vmatpush1.xpose.msra.mxu0 0.0
    %236 = vmatprep.subr.mxu0 0.0
    %237 = vmatpush1.xpose.msra.mxu0 0.0
    %238 = vmatprep.subr.mxu0 0.0
    %239 = vmatpush1.xpose.msra.mxu0 0.0
    %240 = vmatprep.subr.mxu0 0.0
    %241 = vmatpush1.xpose.msra.mxu0 0.0
    %242 = vmatprep.subr.mxu0 0.0
    %243 = vmatpush1.xpose.msra.mxu0 0.0
    %244 = vmatprep.subr.mxu0 0.0
    %245 = vmatpush1.xpose.msra.mxu0 0.0
    %246 = vmatprep.subr.mxu0 0.0
    %247 = vmatpush1.xpose.msra.mxu0 0.0
    %248 = vmatprep.subr.mxu0 0.0
    %249 = vmatpush1.xpose.msra.mxu0 0.0
    %250 = vmatprep.subr.mxu0 0.0
    %251 = vmatpush1.xpose.msra.mxu0 0.0
    %252 = vmatprep.subr.mxu0 0.0
    %253 = vmatpush1.xpose.msra.mxu0 0.0
    %254 = vmatprep.subr.mxu0 0.0
    %255 = vmatpush1.xpose.msra.mxu0 0.0
    %256 = vmatprep.subr.mxu0 0.0
    %257 = vmatpush1.xpose.msra.mxu0 0.0
    %258 = vmatprep.subr.mxu0 0.0
    %259 = vmatpush1.xpose.msra.mxu0 %v228
    %260 = vmatprep.subr.mxu0 0.0
    %261 = vmatpush1.xpose.msra.mxu0 %v226
    %262 = vmatprep.subr.mxu0 0.0
    %263 = vmatpush2.xpose.msra.mxu0 0.0
    %264 = vmatprep.subr.mxu0 0.0
    %265 = vmatpush2.xpose.msra.mxu0 0.0
    %266 = vmatprep.subr.mxu0 0.0
    %267 = vmatpush2.xpose.msra.mxu0 0.0
    %268 = vmatprep.subr.mxu0 0.0
    %269 = vmatpush2.xpose.msra.mxu0 0.0
    %270 = vmatprep.subr.mxu0 0.0
    %271 = vmatpush2.xpose.msra.mxu0 0.0
    %272 = vmatprep.subr.mxu0 0.0
    %273 = vmatpush2.xpose.msra.mxu0 0.0
    %274 = vmatprep.subr.mxu0 0.0
    %275 = vmatpush2.xpose.msra.mxu0 0.0
    %276 = vmatprep.subr.mxu0 0.0
    %277 = vmatpush2.xpose.msra.mxu0 0.0
    %278 = vmatprep.subr.mxu0 0.0
    %279 = vmatpush2.xpose.msra.mxu0 0.0
    %280 = vmatprep.subr.mxu0 0.0
    %281 = vmatpush2.xpose.msra.mxu0 0.0
    %282 = vmatprep.subr.mxu0 0.0
    %283 = vmatpush2.xpose.msra.mxu0 0.0
    %284 = vmatprep.subr.mxu0 0.0
    %285 = vmatpush2.xpose.msra.mxu0 0.0
    %286 = vmatprep.subr.mxu0 0.0
    %287 = vmatpush2.xpose.msra.mxu0 0.0
    %288 = vmatprep.subr.mxu0 0.0
    %289 = vmatpush2.xpose.msra.mxu0 0.0
    %290 = vmatprep.subr.mxu0 0.0
    %291 = vmatpush2.xpose.msra.mxu0 0.0
    %292 = vmatprep.subr.mxu0 0.0
    %293 = vmatpush2.xpose.msra.mxu0 0.0
    %294 = vmatprep.mubr.f32.mxu0 0.0
    %295 = vmatmul.mubr.f32.gmra.mxu0 %v222
    %v296 = vpop.f32.mrf.mxu0
    %v297 = vadd.f32 %v37, %v296
    %v298 = vpop.f32.mrf.mxu0
    %299 = vmatprep.mubr.f32.mxu0 0.0
    %300 = vmatmul.mubr.f32.gmra.mxu0 %v224
    %v301 = vpop.f32.mrf.mxu0
    %v302 = vadd.f32 %v38, %v301
    %v303 = vpop.f32.mrf.mxu0
    %304 = vdwg.mxu0
    %v306 = vsel %vm221, %v36, 0
    %308 = vmatprep.subr.mxu0 0.0
    %309 = vmatpush1.xpose.msra.mxu0 0.0
    %310 = vmatprep.subr.mxu0 0.0
    %311 = vmatpush1.xpose.msra.mxu0 0.0
    %312 = vmatprep.subr.mxu0 0.0
    %313 = vmatpush1.xpose.msra.mxu0 0.0
    %314 = vmatprep.subr.mxu0 0.0
    %315 = vmatpush1.xpose.msra.mxu0 0.0
    %316 = vmatprep.subr.mxu0 0.0
    %317 = vmatpush1.xpose.msra.mxu0 0.0
    %318 = vmatprep.subr.mxu0 0.0
    %319 = vmatpush1.xpose.msra.mxu0 0.0
    %320 = vmatprep.subr.mxu0 0.0
    %321 = vmatpush1.xpose.msra.mxu0 0.0
    %322 = vmatprep.subr.mxu0 0.0
    %323 = vmatpush1.xpose.msra.mxu0 0.0
    %324 = vmatprep.subr.mxu0 0.0
    %325 = vmatpush1.xpose.msra.mxu0 0.0
    %326 = vmatprep.subr.mxu0 0.0
    %327 = vmatpush1.xpose.msra.mxu0 0.0
    %328 = vmatprep.subr.mxu0 0.0
    %329 = vmatpush1.xpose.msra.mxu0 0.0
    %330 = vmatprep.subr.mxu0 0.0
    %331 = vmatpush1.xpose.msra.mxu0 0.0
    %332 = vmatprep.subr.mxu0 0.0
    %333 = vmatpush1.xpose.msra.mxu0 0.0
    %334 = vmatprep.subr.mxu0 0.0
    %335 = vmatpush1.xpose.msra.mxu0 0.0
    %336 = vmatprep.subr.mxu0 0.0
    %337 = vmatpush1.xpose.msra.mxu0 0.0
    %338 = vmatprep.subr.mxu0 0.0
    %339 = vmatpush1.xpose.msra.mxu0 %v306
    %340 = vmatprep.subr.mxu0 0.0
    %341 = vmatpush2.xpose.msra.mxu0 0.0
    %342 = vmatprep.subr.mxu0 0.0
    %343 = vmatpush2.xpose.msra.mxu0 0.0
    %344 = vmatprep.subr.mxu0 0.0
    %345 = vmatpush2.xpose.msra.mxu0 0.0
    %346 = vmatprep.subr.mxu0 0.0
    %347 = vmatpush2.xpose.msra.mxu0 0.0
    %348 = vmatprep.subr.mxu0 0.0
    %349 = vmatpush2.xpose.msra.mxu0 0.0
    %350 = vmatprep.subr.mxu0 0.0
    %351 = vmatpush2.xpose.msra.mxu0 0.0
    %352 = vmatprep.subr.mxu0 0.0
    %353 = vmatpush2.xpose.msra.mxu0 0.0
    %354 = vmatprep.subr.mxu0 0.0
    %355 = vmatpush2.xpose.msra.mxu0 0.0
    %356 = vmatprep.subr.mxu0 0.0
    %357 = vmatpush2.xpose.msra.mxu0 0.0
    %358 = vmatprep.subr.mxu0 0.0
    %359 = vmatpush2.xpose.msra.mxu0 0.0
    %360 = vmatprep.subr.mxu0 0.0
    %361 = vmatpush2.xpose.msra.mxu0 0.0
    %362 = vmatprep.subr.mxu0 0.0
    %363 = vmatpush2.xpose.msra.mxu0 0.0
    %364 = vmatprep.subr.mxu0 0.0
    %365 = vmatpush2.xpose.msra.mxu0 0.0
    %366 = vmatprep.subr.mxu0 0.0
    %367 = vmatpush2.xpose.msra.mxu0 0.0
    %368 = vmatprep.subr.mxu0 0.0
    %369 = vmatpush2.xpose.msra.mxu0 0.0
    %370 = vmatprep.subr.mxu0 0.0
    %371 = vmatpush2.xpose.msra.mxu0 0.0
    %372 = vmatprep.mubr.f32.mxu0 0.0
    %373 = vmatmul.mubr.f32.gmra.mxu0 %v222
    %v374 = vpop.f32.mrf.mxu0
    %v375 = vadd.f32 0.0, %v374
    %v376 = vpop.f32.mrf.mxu0
    %377 = vmatprep.mubr.f32.mxu0 0.0
    %378 = vmatmul.mubr.f32.gmra.mxu0 %v224
    %v379 = vpop.f32.mrf.mxu0
    %v380 = vadd.f32 0.0, %v379
    %v381 = vpop.f32.mrf.mxu0
    %382 = vdwg.mxu0
    %v383 = vsel %vm221, %v297, -inf
    %384 = vmax.xlane.f32.xlu0 %v383
    %v385 = vpop.xlane.xlu0 %384
    %v386 = vsel %vm221, %v302, -inf
    %387 = vmax.xlane.f32.xlu0 %v386
    %v388 = vpop.xlane.xlu0 %387
    %v389 = vsel %vm45, %v375, -inf
    %390 = vmax.xlane.f32.xlu0 %v389
    %v391 = vpop.xlane.xlu0 %390
    %v392 = vsel %vm45, %v380, -inf
    %393 = vmax.xlane.f32.xlu0 %v392
    %v394 = vpop.xlane.xlu0 %393
    %v395 = vmax.f32 %v385, %v391
    %v396 = vmax.f32 %v388, %v394
    %v397 = vsub.f32 %v297, %v395
    %v398 = vsub.f32 %v302, %v396
    %v399 = vmul.f32 %v397, 1.442695
    %v400 = vpow.pop %v399
    %v401 = vmul.f32 %v398, 1.442695
    %v402 = vpow.pop %v401
    %v403 = vsub.f32 %v375, %v395
    %v404 = vsub.f32 %v380, %v396
    %v405 = vmul.f32 %v403, 1.442695
    %v406 = vpow.pop %v405
    %v407 = vmul.f32 %v404, 1.442695
    %v408 = vpow.pop %v407
    %v409 = vsel %vm221, %v400, 0.0
    %410 = vadd.xlane.f32.xlu0 %v409
    %v411 = vpop.xlane.xlu0 %410
    %v412 = vsel %vm221, %v402, 0.0
    %413 = vadd.xlane.f32.xlu0 %v412
    %v414 = vpop.xlane.xlu0 %413
    %v415 = vsel %vm45, %v406, 0.0
    %416 = vadd.xlane.f32.xlu0 %v415
    %v417 = vpop.xlane.xlu0 %416
    %v418 = vsel %vm45, %v408, 0.0
    %419 = vadd.xlane.f32.xlu0 %v418
    %v420 = vpop.xlane.xlu0 %419
    %v421 = vadd.f32 %v411, %v417
    %v422 = vadd.f32 %v414, %v420
    %423 = vrot.lane.b32.xlu0 %v36, 96
    %v424 = vpop.permute.xlu0 %423
    %v427 = vsel %vm45, %v406, 0
    %v430 = vsel %vm45, %v408, 0
    %432 = vmatprep.subr.mxu0 0.0
    %433 = vmatpush1.msra.mxu0 0.0
    %434 = vmatprep.subr.mxu0 0.0
    %435 = vmatpush1.msra.mxu0 0.0
    %436 = vmatprep.subr.mxu0 0.0
    %437 = vmatpush1.msra.mxu0 0.0
    %438 = vmatprep.subr.mxu0 0.0
    %439 = vmatpush1.msra.mxu0 0.0
    %440 = vmatprep.subr.mxu0 0.0
    %441 = vmatpush1.msra.mxu0 0.0
    %442 = vmatprep.subr.mxu0 0.0
    %443 = vmatpush1.msra.mxu0 0.0
    %444 = vmatprep.subr.mxu0 0.0
    %445 = vmatpush1.msra.mxu0 0.0
    %446 = vmatprep.subr.mxu0 0.0
    %447 = vmatpush1.msra.mxu0 0.0
    %448 = vmatprep.subr.mxu0 0.0
    %449 = vmatpush1.msra.mxu0 0.0
    %450 = vmatprep.subr.mxu0 0.0
    %451 = vmatpush1.msra.mxu0 0.0
    %452 = vmatprep.subr.mxu0 0.0
    %453 = vmatpush1.msra.mxu0 0.0
    %454 = vmatprep.subr.mxu0 0.0
    %455 = vmatpush1.msra.mxu0 0.0
    %456 = vmatprep.subr.mxu0 0.0
    %457 = vmatpush1.msra.mxu0 0.0
    %458 = vmatprep.subr.mxu0 0.0
    %459 = vmatpush1.msra.mxu0 0.0
    %460 = vmatprep.subr.mxu0 0.0
    %461 = vmatpush1.msra.mxu0 0.0
    %462 = vmatprep.subr.mxu0 0.0
    %463 = vmatpush1.msra.mxu0 %v424
    %464 = vmatprep.subr.mxu0 0.0
    %465 = vmatpush2.msra.mxu0 0.0
    %466 = vmatprep.subr.mxu0 0.0
    %467 = vmatpush2.msra.mxu0 0.0
    %468 = vmatprep.subr.mxu0 0.0
    %469 = vmatpush2.msra.mxu0 0.0
    %470 = vmatprep.subr.mxu0 0.0
    %471 = vmatpush2.msra.mxu0 0.0
    %472 = vmatprep.subr.mxu0 0.0
    %473 = vmatpush2.msra.mxu0 0.0
    %474 = vmatprep.subr.mxu0 0.0
    %475 = vmatpush2.msra.mxu0 0.0
    %476 = vmatprep.subr.mxu0 0.0
    %477 = vmatpush2.msra.mxu0 0.0
    %478 = vmatprep.subr.mxu0 0.0
    %479 = vmatpush2.msra.mxu0 0.0
    %480 = vmatprep.subr.mxu0 0.0
    %481 = vmatpush2.msra.mxu0 0.0
    %482 = vmatprep.subr.mxu0 0.0
    %483 = vmatpush2.msra.mxu0 0.0
    %484 = vmatprep.subr.mxu0 0.0
    %485 = vmatpush2.msra.mxu0 0.0
    %486 = vmatprep.subr.mxu0 0.0
    %487 = vmatpush2.msra.mxu0 0.0
    %488 = vmatprep.subr.mxu0 0.0
    %489 = vmatpush2.msra.mxu0 0.0
    %490 = vmatprep.subr.mxu0 0.0
    %491 = vmatpush2.msra.mxu0 0.0
    %492 = vmatprep.subr.mxu0 0.0
    %493 = vmatpush2.msra.mxu0 0.0
    %494 = vmatprep.subr.mxu0 0.0
    %495 = vmatpush2.msra.mxu0 0.0
    %496 = vmatprep.mubr.f32.mxu0 0.0
    %497 = vmatmul.mubr.f32.gmra.mxu0 %v427
    %v498 = vpop.f32.mrf.mxu0
    %v499 = vadd.f32 0.0, %v498
    %v500 = vpop.f32.mrf.mxu0
    %501 = vmatprep.mubr.f32.mxu0 0.0
    %502 = vmatmul.mubr.f32.gmra.mxu0 %v430
    %v503 = vpop.f32.mrf.mxu0
    %v504 = vadd.f32 0.0, %v503
    %v505 = vpop.f32.mrf.mxu0
    %506 = vdwg.mxu0
    %507 = vrot.lane.b32.xlu0 %v207, 64
    %v508 = vpop.permute.xlu0 %507
    %509 = vrot.lane.b32.xlu0 %v212, 64
    %v510 = vpop.permute.xlu0 %509
    %v514 = vsel %vm221, %v400, 0
    %v517 = vsel %vm221, %v402, 0
    %519 = vmatprep.subr.mxu0 0.0
    %520 = vmatpush1.msra.mxu0 0.0
    %521 = vmatprep.subr.mxu0 0.0
    %522 = vmatpush1.msra.mxu0 0.0
    %523 = vmatprep.subr.mxu0 0.0
    %524 = vmatpush1.msra.mxu0 0.0
    %525 = vmatprep.subr.mxu0 0.0
    %526 = vmatpush1.msra.mxu0 0.0
    %527 = vmatprep.subr.mxu0 0.0
    %528 = vmatpush1.msra.mxu0 0.0
    %529 = vmatprep.subr.mxu0 0.0
    %530 = vmatpush1.msra.mxu0 0.0
    %531 = vmatprep.subr.mxu0 0.0
    %532 = vmatpush1.msra.mxu0 0.0
    %533 = vmatprep.subr.mxu0 0.0
    %534 = vmatpush1.msra.mxu0 0.0
    %535 = vmatprep.subr.mxu0 0.0
    %536 = vmatpush1.msra.mxu0 0.0
    %537 = vmatprep.subr.mxu0 0.0
    %538 = vmatpush1.msra.mxu0 0.0
    %539 = vmatprep.subr.mxu0 0.0
    %540 = vmatpush1.msra.mxu0 0.0
    %541 = vmatprep.subr.mxu0 0.0
    %542 = vmatpush1.msra.mxu0 0.0
    %543 = vmatprep.subr.mxu0 0.0
    %544 = vmatpush1.msra.mxu0 0.0
    %545 = vmatprep.subr.mxu0 0.0
    %546 = vmatpush1.msra.mxu0 0.0
    %547 = vmatprep.subr.mxu0 0.0
    %548 = vmatpush1.msra.mxu0 %v510
    %549 = vmatprep.subr.mxu0 0.0
    %550 = vmatpush1.msra.mxu0 %v508
    %551 = vmatprep.subr.mxu0 0.0
    %552 = vmatpush2.msra.mxu0 0.0
    %553 = vmatprep.subr.mxu0 0.0
    %554 = vmatpush2.msra.mxu0 0.0
    %555 = vmatprep.subr.mxu0 0.0
    %556 = vmatpush2.msra.mxu0 0.0
    %557 = vmatprep.subr.mxu0 0.0
    %558 = vmatpush2.msra.mxu0 0.0
    %559 = vmatprep.subr.mxu0 0.0
    %560 = vmatpush2.msra.mxu0 0.0
    %561 = vmatprep.subr.mxu0 0.0
    %562 = vmatpush2.msra.mxu0 0.0
    %563 = vmatprep.subr.mxu0 0.0
    %564 = vmatpush2.msra.mxu0 0.0
    %565 = vmatprep.subr.mxu0 0.0
    %566 = vmatpush2.msra.mxu0 0.0
    %567 = vmatprep.subr.mxu0 0.0
    %568 = vmatpush2.msra.mxu0 0.0
    %569 = vmatprep.subr.mxu0 0.0
    %570 = vmatpush2.msra.mxu0 0.0
    %571 = vmatprep.subr.mxu0 0.0
    %572 = vmatpush2.msra.mxu0 0.0
    %573 = vmatprep.subr.mxu0 0.0
    %574 = vmatpush2.msra.mxu0 0.0
    %575 = vmatprep.subr.mxu0 0.0
    %576 = vmatpush2.msra.mxu0 0.0
    %577 = vmatprep.subr.mxu0 0.0
    %578 = vmatpush2.msra.mxu0 0.0
    %579 = vmatprep.subr.mxu0 0.0
    %580 = vmatpush2.msra.mxu0 0.0
    %581 = vmatprep.subr.mxu0 0.0
    %582 = vmatpush2.msra.mxu0 0.0
    %583 = vmatprep.mubr.f32.mxu0 0.0
    %584 = vmatmul.mubr.f32.gmra.mxu0 %v514
    %v585 = vpop.f32.mrf.mxu0
    %v586 = vadd.f32 %v499, %v585
    %v587 = vpop.f32.mrf.mxu0
    %588 = vmatprep.mubr.f32.mxu0 0.0
    %589 = vmatmul.mubr.f32.gmra.mxu0 %v517
    %v590 = vpop.f32.mrf.mxu0
    %v591 = vadd.f32 %v504, %v590
    %v592 = vpop.f32.mrf.mxu0
    %593 = vdwg.mxu0
    %v594 = vrcp.pop %v421
    %v595 = vmul.f32 1.0, %v594
    %v596 = vrcp.pop %v422
    %v597 = vmul.f32 1.0, %v596
    %v598 = vmul.f32 %v586, %v595
    %v599 = vmul.f32 %v591, %v597
    %v600 = vld [vmem:[#allocation2 + $0x48] sm:$0xff]
    %v601 = vld [vmem:[#allocation2 + $0x50] sm:$0xff]
    %602 = vrot.lane.b32.xlu0 %v207, 112
    %v603 = vpop.permute.xlu0 %602
    %604 = vrot.lane.b32.xlu0 %v212, 112
    %v605 = vpop.permute.xlu0 %604
    %606 = vrot.lane.b32.xlu0 %v207, 80
    %v607 = vpop.permute.xlu0 %606
    %608 = vrot.lane.b32.xlu0 %v212, 80
    %v609 = vpop.permute.xlu0 %608
    %v610 = vsel %vm221, %v603, 0
    %v612 = vsel %vm221, %v605, 0
    %v614 = vsel %vm221, %v607, 0
    %v616 = vsel %vm221, %v609, 0
    %618 = vmatprep.subr.mxu0 0.0
    %619 = vmatpush1.xpose.msra.mxu0 0.0
    %620 = vmatprep.subr.mxu0 0.0
    %621 = vmatpush1.xpose.msra.mxu0 0.0
    %622 = vmatprep.subr.mxu0 0.0
    %623 = vmatpush1.xpose.msra.mxu0 0.0
    %624 = vmatprep.subr.mxu0 0.0
    %625 = vmatpush1.xpose.msra.mxu0 0.0
    %626 = vmatprep.subr.mxu0 0.0
    %627 = vmatpush1.xpose.msra.mxu0 0.0
    %628 = vmatprep.subr.mxu0 0.0
    %629 = vmatpush1.xpose.msra.mxu0 0.0
    %630 = vmatprep.subr.mxu0 0.0
    %631 = vmatpush1.xpose.msra.mxu0 0.0
    %632 = vmatprep.subr.mxu0 0.0
    %633 = vmatpush1.xpose.msra.mxu0 0.0
    %634 = vmatprep.subr.mxu0 0.0
    %635 = vmatpush1.xpose.msra.mxu0 0.0
    %636 = vmatprep.subr.mxu0 0.0
    %637 = vmatpush1.xpose.msra.mxu0 0.0
    %638 = vmatprep.subr.mxu0 0.0
    %639 = vmatpush1.xpose.msra.mxu0 0.0
    %640 = vmatprep.subr.mxu0 0.0
    %641 = vmatpush1.xpose.msra.mxu0 0.0
    %642 = vmatprep.subr.mxu0 0.0
    %643 = vmatpush1.xpose.msra.mxu0 0.0
    %644 = vmatprep.subr.mxu0 0.0
    %645 = vmatpush1.xpose.msra.mxu0 0.0
    %646 = vmatprep.subr.mxu0 0.0
    %647 = vmatpush1.xpose.msra.mxu0 %v616
    %648 = vmatprep.subr.mxu0 0.0
    %649 = vmatpush1.xpose.msra.mxu0 %v614
    %650 = vmatprep.subr.mxu0 0.0
    %651 = vmatpush2.xpose.msra.mxu0 0.0
    %652 = vmatprep.subr.mxu0 0.0
    %653 = vmatpush2.xpose.msra.mxu0 0.0
    %654 = vmatprep.subr.mxu0 0.0
    %655 = vmatpush2.xpose.msra.mxu0 0.0
    %656 = vmatprep.subr.mxu0 0.0
    %657 = vmatpush2.xpose.msra.mxu0 0.0
    %658 = vmatprep.subr.mxu0 0.0
    %659 = vmatpush2.xpose.msra.mxu0 0.0
    %660 = vmatprep.subr.mxu0 0.0
    %661 = vmatpush2.xpose.msra.mxu0 0.0
    %662 = vmatprep.subr.mxu0 0.0
    %663 = vmatpush2.xpose.msra.mxu0 0.0
    %664 = vmatprep.subr.mxu0 0.0
    %665 = vmatpush2.xpose.msra.mxu0 0.0
    %666 = vmatprep.subr.mxu0 0.0
    %667 = vmatpush2.xpose.msra.mxu0 0.0
    %668 = vmatprep.subr.mxu0 0.0
    %669 = vmatpush2.xpose.msra.mxu0 0.0
    %670 = vmatprep.subr.mxu0 0.0
    %671 = vmatpush2.xpose.msra.mxu0 0.0
    %672 = vmatprep.subr.mxu0 0.0
    %673 = vmatpush2.xpose.msra.mxu0 0.0
    %674 = vmatprep.subr.mxu0 0.0
    %675 = vmatpush2.xpose.msra.mxu0 0.0
    %676 = vmatprep.subr.mxu0 0.0
    %677 = vmatpush2.xpose.msra.mxu0 0.0
    %678 = vmatprep.subr.mxu0 0.0
    %679 = vmatpush2.xpose.msra.mxu0 0.0
    %680 = vmatprep.subr.mxu0 0.0
    %681 = vmatpush2.xpose.msra.mxu0 0.0
    %682 = vmatprep.mubr.f32.mxu0 0.0
    %683 = vmatmul.mubr.f32.gmra.mxu0 %v610
    %v684 = vpop.f32.mrf.mxu0
    %v685 = vadd.f32 %v37, %v684
    %v686 = vpop.f32.mrf.mxu0
    %687 = vmatprep.mubr.f32.mxu0 0.0
    %688 = vmatmul.mubr.f32.gmra.mxu0 %v612
    %v689 = vpop.f32.mrf.mxu0
    %v690 = vadd.f32 %v38, %v689
    %v691 = vpop.f32.mrf.mxu0
    %692 = vdwg.mxu0
    %693 = vrot.lane.b32.xlu0 %v36, 112
    %v694 = vpop.permute.xlu0 %693
    %v695 = vsel %vm221, %v694, 0
    %697 = vmatprep.subr.mxu0 0.0
    %698 = vmatpush1.xpose.msra.mxu0 0.0
    %699 = vmatprep.subr.mxu0 0.0
    %700 = vmatpush1.xpose.msra.mxu0 0.0
    %701 = vmatprep.subr.mxu0 0.0
    %702 = vmatpush1.xpose.msra.mxu0 0.0
    %703 = vmatprep.subr.mxu0 0.0
    %704 = vmatpush1.xpose.msra.mxu0 0.0
    %705 = vmatprep.subr.mxu0 0.0
    %706 = vmatpush1.xpose.msra.mxu0 0.0
    %707 = vmatprep.subr.mxu0 0.0
    %708 = vmatpush1.xpose.msra.mxu0 0.0
    %709 = vmatprep.subr.mxu0 0.0
    %710 = vmatpush1.xpose.msra.mxu0 0.0
    %711 = vmatprep.subr.mxu0 0.0
    %712 = vmatpush1.xpose.msra.mxu0 0.0
    %713 = vmatprep.subr.mxu0 0.0
    %714 = vmatpush1.xpose.msra.mxu0 0.0
    %715 = vmatprep.subr.mxu0 0.0
    %716 = vmatpush1.xpose.msra.mxu0 0.0
    %717 = vmatprep.subr.mxu0 0.0
    %718 = vmatpush1.xpose.msra.mxu0 0.0
    %719 = vmatprep.subr.mxu0 0.0
    %720 = vmatpush1.xpose.msra.mxu0 0.0
    %721 = vmatprep.subr.mxu0 0.0
    %722 = vmatpush1.xpose.msra.mxu0 0.0
    %723 = vmatprep.subr.mxu0 0.0
    %724 = vmatpush1.xpose.msra.mxu0 0.0
    %725 = vmatprep.subr.mxu0 0.0
    %726 = vmatpush1.xpose.msra.mxu0 0.0
    %727 = vmatprep.subr.mxu0 0.0
    %728 = vmatpush1.xpose.msra.mxu0 %v695
    %729 = vmatprep.subr.mxu0 0.0
    %730 = vmatpush2.xpose.msra.mxu0 0.0
    %731 = vmatprep.subr.mxu0 0.0
    %732 = vmatpush2.xpose.msra.mxu0 0.0
    %733 = vmatprep.subr.mxu0 0.0
    %734 = vmatpush2.xpose.msra.mxu0 0.0
    %735 = vmatprep.subr.mxu0 0.0
    %736 = vmatpush2.xpose.msra.mxu0 0.0
    %737 = vmatprep.subr.mxu0 0.0
    %738 = vmatpush2.xpose.msra.mxu0 0.0
    %739 = vmatprep.subr.mxu0 0.0
    %740 = vmatpush2.xpose.msra.mxu0 0.0
    %741 = vmatprep.subr.mxu0 0.0
    %742 = vmatpush2.xpose.msra.mxu0 0.0
    %743 = vmatprep.subr.mxu0 0.0
    %744 = vmatpush2.xpose.msra.mxu0 0.0
    %745 = vmatprep.subr.mxu0 0.0
    %746 = vmatpush2.xpose.msra.mxu0 0.0
    %747 = vmatprep.subr.mxu0 0.0
    %748 = vmatpush2.xpose.msra.mxu0 0.0
    %749 = vmatprep.subr.mxu0 0.0
    %750 = vmatpush2.xpose.msra.mxu0 0.0
    %751 = vmatprep.subr.mxu0 0.0
    %752 = vmatpush2.xpose.msra.mxu0 0.0
    %753 = vmatprep.subr.mxu0 0.0
    %754 = vmatpush2.xpose.msra.mxu0 0.0
    %755 = vmatprep.subr.mxu0 0.0
    %756 = vmatpush2.xpose.msra.mxu0 0.0
    %757 = vmatprep.subr.mxu0 0.0
    %758 = vmatpush2.xpose.msra.mxu0 0.0
    %759 = vmatprep.subr.mxu0 0.0
    %760 = vmatpush2.xpose.msra.mxu0 0.0
    %761 = vmatprep.mubr.f32.mxu0 0.0
    %762 = vmatmul.mubr.f32.gmra.mxu0 %v610
    %v763 = vpop.f32.mrf.mxu0
    %v764 = vadd.f32 0.0, %v763
    %v765 = vpop.f32.mrf.mxu0
    %766 = vmatprep.mubr.f32.mxu0 0.0
    %767 = vmatmul.mubr.f32.gmra.mxu0 %v612
    %v768 = vpop.f32.mrf.mxu0
    %v769 = vadd.f32 0.0, %v768
    %v770 = vpop.f32.mrf.mxu0
    %771 = vdwg.mxu0
    %v772 = vsel %vm221, %v685, -inf
    %773 = vmax.xlane.f32.xlu0 %v772
    %v774 = vpop.xlane.xlu0 %773
    %v775 = vsel %vm221, %v690, -inf
    %776 = vmax.xlane.f32.xlu0 %v775
    %v777 = vpop.xlane.xlu0 %776
    %v778 = vsel %vm45, %v764, -inf
    %779 = vmax.xlane.f32.xlu0 %v778
    %v780 = vpop.xlane.xlu0 %779
    %v781 = vsel %vm45, %v769, -inf
    %782 = vmax.xlane.f32.xlu0 %v781
    %v783 = vpop.xlane.xlu0 %782
    %v784 = vmax.f32 %v774, %v780
    %v785 = vmax.f32 %v777, %v783
    %v786 = vsub.f32 %v685, %v784
    %v787 = vsub.f32 %v690, %v785
    %v788 = vmul.f32 %v786, 1.442695
    %v789 = vpow.pop %v788
    %v790 = vmul.f32 %v787, 1.442695
    %v791 = vpow.pop %v790
    %v792 = vsub.f32 %v764, %v784
    %v793 = vsub.f32 %v769, %v785
    %v794 = vmul.f32 %v792, 1.442695
    %v795 = vpow.pop %v794
    %v796 = vmul.f32 %v793, 1.442695
    %v797 = vpow.pop %v796
    %v798 = vsel %vm221, %v789, 0.0
    %799 = vadd.xlane.f32.xlu0 %v798
    %v800 = vpop.xlane.xlu0 %799
    %v801 = vsel %vm221, %v791, 0.0
    %802 = vadd.xlane.f32.xlu0 %v801
    %v803 = vpop.xlane.xlu0 %802
    %v804 = vsel %vm45, %v795, 0.0
    %805 = vadd.xlane.f32.xlu0 %v804
    %v806 = vpop.xlane.xlu0 %805
    %v807 = vsel %vm45, %v797, 0.0
    %808 = vadd.xlane.f32.xlu0 %v807
    %v809 = vpop.xlane.xlu0 %808
    %v810 = vadd.f32 %v800, %v806
    %v811 = vadd.f32 %v803, %v809
    %812 = vrot.lane.b32.xlu0 %v36, 80
    %v813 = vpop.permute.xlu0 %812
    %v816 = vsel %vm45, %v795, 0
    %v819 = vsel %vm45, %v797, 0
    %821 = vmatprep.subr.mxu0 0.0
    %822 = vmatpush1.msra.mxu0 0.0
    %823 = vmatprep.subr.mxu0 0.0
    %824 = vmatpush1.msra.mxu0 0.0
    %825 = vmatprep.subr.mxu0 0.0
    %826 = vmatpush1.msra.mxu0 0.0
    %827 = vmatprep.subr.mxu0 0.0
    %828 = vmatpush1.msra.mxu0 0.0
    %829 = vmatprep.subr.mxu0 0.0
    %830 = vmatpush1.msra.mxu0 0.0
    %831 = vmatprep.subr.mxu0 0.0
    %832 = vmatpush1.msra.mxu0 0.0
    %833 = vmatprep.subr.mxu0 0.0
    %834 = vmatpush1.msra.mxu0 0.0
    %835 = vmatprep.subr.mxu0 0.0
    %836 = vmatpush1.msra.mxu0 0.0
    %837 = vmatprep.subr.mxu0 0.0
    %838 = vmatpush1.msra.mxu0 0.0
    %839 = vmatprep.subr.mxu0 0.0
    %840 = vmatpush1.msra.mxu0 0.0
    %841 = vmatprep.subr.mxu0 0.0
    %842 = vmatpush1.msra.mxu0 0.0
    %843 = vmatprep.subr.mxu0 0.0
    %844 = vmatpush1.msra.mxu0 0.0
    %845 = vmatprep.subr.mxu0 0.0
    %846 = vmatpush1.msra.mxu0 0.0
    %847 = vmatprep.subr.mxu0 0.0
    %848 = vmatpush1.msra.mxu0 0.0
    %849 = vmatprep.subr.mxu0 0.0
    %850 = vmatpush1.msra.mxu0 0.0
    %851 = vmatprep.subr.mxu0 0.0
    %852 = vmatpush1.msra.mxu0 %v813
    %853 = vmatprep.subr.mxu0 0.0
    %854 = vmatpush2.msra.mxu0 0.0
    %855 = vmatprep.subr.mxu0 0.0
    %856 = vmatpush2.msra.mxu0 0.0
    %857 = vmatprep.subr.mxu0 0.0
    %858 = vmatpush2.msra.mxu0 0.0
    %859 = vmatprep.subr.mxu0 0.0
    %860 = vmatpush2.msra.mxu0 0.0
    %861 = vmatprep.subr.mxu0 0.0
    %862 = vmatpush2.msra.mxu0 0.0
    %863 = vmatprep.subr.mxu0 0.0
    %864 = vmatpush2.msra.mxu0 0.0
    %865 = vmatprep.subr.mxu0 0.0
    %866 = vmatpush2.msra.mxu0 0.0
    %867 = vmatprep.subr.mxu0 0.0
    %868 = vmatpush2.msra.mxu0 0.0
    %869 = vmatprep.subr.mxu0 0.0
    %870 = vmatpush2.msra.mxu0 0.0
    %871 = vmatprep.subr.mxu0 0.0
    %872 = vmatpush2.msra.mxu0 0.0
    %873 = vmatprep.subr.mxu0 0.0
    %874 = vmatpush2.msra.mxu0 0.0
    %875 = vmatprep.subr.mxu0 0.0
    %876 = vmatpush2.msra.mxu0 0.0
    %877 = vmatprep.subr.mxu0 0.0
    %878 = vmatpush2.msra.mxu0 0.0
    %879 = vmatprep.subr.mxu0 0.0
    %880 = vmatpush2.msra.mxu0 0.0
    %881 = vmatprep.subr.mxu0 0.0
    %882 = vmatpush2.msra.mxu0 0.0
    %883 = vmatprep.subr.mxu0 0.0
    %884 = vmatpush2.msra.mxu0 0.0
    %885 = vmatprep.mubr.f32.mxu0 0.0
    %886 = vmatmul.mubr.f32.gmra.mxu0 %v816
    %v887 = vpop.f32.mrf.mxu0
    %v888 = vadd.f32 0.0, %v887
    %v889 = vpop.f32.mrf.mxu0
    %890 = vmatprep.mubr.f32.mxu0 0.0
    %891 = vmatmul.mubr.f32.gmra.mxu0 %v819
    %v892 = vpop.f32.mrf.mxu0
    %v893 = vadd.f32 0.0, %v892
    %v894 = vpop.f32.mrf.mxu0
    %895 = vdwg.mxu0
    %896 = vrot.lane.b32.xlu0 %v207, 48
    %v897 = vpop.permute.xlu0 %896
    %898 = vrot.lane.b32.xlu0 %v212, 48
    %v899 = vpop.permute.xlu0 %898
    %v903 = vsel %vm221, %v789, 0
    %v906 = vsel %vm221, %v791, 0
    %908 = vmatprep.subr.mxu0 0.0
    %909 = vmatpush1.msra.mxu0 0.0
    %910 = vmatprep.subr.mxu0 0.0
    %911 = vmatpush1.msra.mxu0 0.0
    %912 = vmatprep.subr.mxu0 0.0
    %913 = vmatpush1.msra.mxu0 0.0
    %914 = vmatprep.subr.mxu0 0.0
    %915 = vmatpush1.msra.mxu0 0.0
    %916 = vmatprep.subr.mxu0 0.0
    %917 = vmatpush1.msra.mxu0 0.0
    %918 = vmatprep.subr.mxu0 0.0
    %919 = vmatpush1.msra.mxu0 0.0
    %920 = vmatprep.subr.mxu0 0.0
    %921 = vmatpush1.msra.mxu0 0.0
    %922 = vmatprep.subr.mxu0 0.0
    %923 = vmatpush1.msra.mxu0 0.0
    %924 = vmatprep.subr.mxu0 0.0
    %925 = vmatpush1.msra.mxu0 0.0
    %926 = vmatprep.subr.mxu0 0.0
    %927 = vmatpush1.msra.mxu0 0.0
    %928 = vmatprep.subr.mxu0 0.0
    %929 = vmatpush1.msra.mxu0 0.0
    %930 = vmatprep.subr.mxu0 0.0
    %931 = vmatpush1.msra.mxu0 0.0
    %932 = vmatprep.subr.mxu0 0.0
    %933 = vmatpush1.msra.mxu0 0.0
    %934 = vmatprep.subr.mxu0 0.0
    %935 = vmatpush1.msra.mxu0 0.0
    %936 = vmatprep.subr.mxu0 0.0
    %937 = vmatpush1.msra.mxu0 %v899
    %938 = vmatprep.subr.mxu0 0.0
    %939 = vmatpush1.msra.mxu0 %v897
    %940 = vmatprep.subr.mxu0 0.0
    %941 = vmatpush2.msra.mxu0 0.0
    %942 = vmatprep.subr.mxu0 0.0
    %943 = vmatpush2.msra.mxu0 0.0
    %944 = vmatprep.subr.mxu0 0.0
    %945 = vmatpush2.msra.mxu0 0.0
    %946 = vmatprep.subr.mxu0 0.0
    %947 = vmatpush2.msra.mxu0 0.0
    %948 = vmatprep.subr.mxu0 0.0
    %949 = vmatpush2.msra.mxu0 0.0
    %950 = vmatprep.subr.mxu0 0.0
    %951 = vmatpush2.msra.mxu0 0.0
    %952 = vmatprep.subr.mxu0 0.0
    %953 = vmatpush2.msra.mxu0 0.0
    %954 = vmatprep.subr.mxu0 0.0
    %955 = vmatpush2.msra.mxu0 0.0
    %956 = vmatprep.subr.mxu0 0.0
    %957 = vmatpush2.msra.mxu0 0.0
    %958 = vmatprep.subr.mxu0 0.0
    %959 = vmatpush2.msra.mxu0 0.0
    %960 = vmatprep.subr.mxu0 0.0
    %961 = vmatpush2.msra.mxu0 0.0
    %962 = vmatprep.subr.mxu0 0.0
    %963 = vmatpush2.msra.mxu0 0.0
    %964 = vmatprep.subr.mxu0 0.0
    %965 = vmatpush2.msra.mxu0 0.0
    %966 = vmatprep.subr.mxu0 0.0
    %967 = vmatpush2.msra.mxu0 0.0
    %968 = vmatprep.subr.mxu0 0.0
    %969 = vmatpush2.msra.mxu0 0.0
    %970 = vmatprep.subr.mxu0 0.0
    %971 = vmatpush2.msra.mxu0 0.0
    %972 = vmatprep.mubr.f32.mxu0 0.0
    %973 = vmatmul.mubr.f32.gmra.mxu0 %v903
    %v974 = vpop.f32.mrf.mxu0
    %v975 = vadd.f32 %v888, %v974
    %v976 = vpop.f32.mrf.mxu0
    %977 = vmatprep.mubr.f32.mxu0 0.0
    %978 = vmatmul.mubr.f32.gmra.mxu0 %v906
    %v979 = vpop.f32.mrf.mxu0
    %v980 = vadd.f32 %v893, %v979
    %v981 = vpop.f32.mrf.mxu0
    %982 = vdwg.mxu0
    %v983 = vrcp.pop %v810
    %v984 = vmul.f32 1.0, %v983
    %v985 = vrcp.pop %v811
    %v986 = vmul.f32 1.0, %v985
    %v987 = vmul.f32 %v975, %v984
    %v988 = vmul.f32 %v980, %v986
    %v989 = vld [vmem:[#allocation2 + $0x58] sm:$0xff]
    %v990 = vld [vmem:[#allocation2 + $0x60] sm:$0xff]
    %v992 = vsel %vm221, %v987, 0
    %v995 = vsel %vm221, %v988, 0
    %997 = vmatprep.subr.mxu0 0.0
    %998 = vmatpush1.msra.mxu0 0.0
    %999 = vmatprep.subr.mxu0 0.0
    %1000 = vmatpush1.msra.mxu0 0.0
    %1001 = vmatprep.subr.mxu0 0.0
    %1002 = vmatpush1.msra.mxu0 0.0
    %1003 = vmatprep.subr.mxu0 0.0
    %1004 = vmatpush1.msra.mxu0 0.0
    %1005 = vmatprep.subr.mxu0 0.0
    %1006 = vmatpush1.msra.mxu0 0.0
    %1007 = vmatprep.subr.mxu0 0.0
    %1008 = vmatpush1.msra.mxu0 0.0
    %1009 = vmatprep.subr.mxu0 0.0
    %1010 = vmatpush1.msra.mxu0 0.0
    %1011 = vmatprep.subr.mxu0 0.0
    %1012 = vmatpush1.msra.mxu0 0.0
    %1013 = vmatprep.subr.mxu0 0.0
    %1014 = vmatpush1.msra.mxu0 0.0
    %1015 = vmatprep.subr.mxu0 0.0
    %1016 = vmatpush1.msra.mxu0 0.0
    %1017 = vmatprep.subr.mxu0 0.0
    %1018 = vmatpush1.msra.mxu0 0.0
    %1019 = vmatprep.subr.mxu0 0.0
    %1020 = vmatpush1.msra.mxu0 0.0
    %1021 = vmatprep.subr.mxu0 0.0
    %1022 = vmatpush1.msra.mxu0 0.0
    %1023 = vmatprep.subr.mxu0 0.0
    %1024 = vmatpush1.msra.mxu0 0.0
    %1025 = vmatprep.subr.mxu0 0.0
    %1026 = vmatpush1.msra.mxu0 %v990
    %1027 = vmatprep.subr.mxu0 0.0
    %1028 = vmatpush1.msra.mxu0 %v989
    %1029 = vmatprep.subr.mxu0 0.0
    %1030 = vmatpush2.msra.mxu0 0.0
    %1031 = vmatprep.subr.mxu0 0.0
    %1032 = vmatpush2.msra.mxu0 0.0
    %1033 = vmatprep.subr.mxu0 0.0
    %1034 = vmatpush2.msra.mxu0 0.0
    %1035 = vmatprep.subr.mxu0 0.0
    %1036 = vmatpush2.msra.mxu0 0.0
    %1037 = vmatprep.subr.mxu0 0.0
    %1038 = vmatpush2.msra.mxu0 0.0
    %1039 = vmatprep.subr.mxu0 0.0
    %1040 = vmatpush2.msra.mxu0 0.0
    %1041 = vmatprep.subr.mxu0 0.0
    %1042 = vmatpush2.msra.mxu0 0.0
    %1043 = vmatprep.subr.mxu0 0.0
    %1044 = vmatpush2.msra.mxu0 0.0
    %1045 = vmatprep.subr.mxu0 0.0
    %1046 = vmatpush2.msra.mxu0 0.0
    %1047 = vmatprep.subr.mxu0 0.0
    %1048 = vmatpush2.msra.mxu0 0.0
    %1049 = vmatprep.subr.mxu0 0.0
    %1050 = vmatpush2.msra.mxu0 0.0
    %1051 = vmatprep.subr.mxu0 0.0
    %1052 = vmatpush2.msra.mxu0 0.0
    %1053 = vmatprep.subr.mxu0 0.0
    %1054 = vmatpush2.msra.mxu0 0.0
    %1055 = vmatprep.subr.mxu0 0.0
    %1056 = vmatpush2.msra.mxu0 0.0
    %1057 = vmatprep.subr.mxu0 0.0
    %1058 = vmatpush2.msra.mxu0 0.0
    %1059 = vmatprep.subr.mxu0 0.0
    %1060 = vmatpush2.msra.mxu0 0.0
    %1061 = vmatprep.mubr.f32.mxu0 0.0
    %1062 = vmatmul.mubr.f32.gmra.mxu0 %v992
    %v1063 = vpop.f32.mrf.mxu0
    %v1064 = vadd.f32 0.0, %v1063
    %v1065 = vpop.f32.mrf.mxu0
    %1066 = vmatprep.mubr.f32.mxu0 0.0
    %1067 = vmatmul.mubr.f32.gmra.mxu0 %v995
    %v1068 = vpop.f32.mrf.mxu0
    %v1069 = vadd.f32 0.0, %v1068
    %v1070 = vpop.f32.mrf.mxu0
    %1071 = vdwg.mxu0
    %v1073 = vsel %vm221, %v598, 0
    %v1076 = vsel %vm221, %v599, 0
    %1078 = vmatprep.subr.mxu0 0.0
    %1079 = vmatpush1.msra.mxu0 0.0
    %1080 = vmatprep.subr.mxu0 0.0
    %1081 = vmatpush1.msra.mxu0 0.0
    %1082 = vmatprep.subr.mxu0 0.0
    %1083 = vmatpush1.msra.mxu0 0.0
    %1084 = vmatprep.subr.mxu0 0.0
    %1085 = vmatpush1.msra.mxu0 0.0
    %1086 = vmatprep.subr.mxu0 0.0
    %1087 = vmatpush1.msra.mxu0 0.0
    %1088 = vmatprep.subr.mxu0 0.0
    %1089 = vmatpush1.msra.mxu0 0.0
    %1090 = vmatprep.subr.mxu0 0.0
    %1091 = vmatpush1.msra.mxu0 0.0
    %1092 = vmatprep.subr.mxu0 0.0
    %1093 = vmatpush1.msra.mxu0 0.0
    %1094 = vmatprep.subr.mxu0 0.0
    %1095 = vmatpush1.msra.mxu0 0.0
    %1096 = vmatprep.subr.mxu0 0.0
    %1097 = vmatpush1.msra.mxu0 0.0
    %1098 = vmatprep.subr.mxu0 0.0
    %1099 = vmatpush1.msra.mxu0 0.0
    %1100 = vmatprep.subr.mxu0 0.0
    %1101 = vmatpush1.msra.mxu0 0.0
    %1102 = vmatprep.subr.mxu0 0.0
    %1103 = vmatpush1.msra.mxu0 0.0
    %1104 = vmatprep.subr.mxu0 0.0
    %1105 = vmatpush1.msra.mxu0 0.0
    %1106 = vmatprep.subr.mxu0 0.0
    %1107 = vmatpush1.msra.mxu0 %v601
    %1108 = vmatprep.subr.mxu0 0.0
    %1109 = vmatpush1.msra.mxu0 %v600
    %1110 = vmatprep.subr.mxu0 0.0
    %1111 = vmatpush2.msra.mxu0 0.0
    %1112 = vmatprep.subr.mxu0 0.0
    %1113 = vmatpush2.msra.mxu0 0.0
    %1114 = vmatprep.subr.mxu0 0.0
    %1115 = vmatpush2.msra.mxu0 0.0
    %1116 = vmatprep.subr.mxu0 0.0
    %1117 = vmatpush2.msra.mxu0 0.0
    %1118 = vmatprep.subr.mxu0 0.0
    %1119 = vmatpush2.msra.mxu0 0.0
    %1120 = vmatprep.subr.mxu0 0.0
    %1121 = vmatpush2.msra.mxu0 0.0
    %1122 = vmatprep.subr.mxu0 0.0
    %1123 = vmatpush2.msra.mxu0 0.0
    %1124 = vmatprep.subr.mxu0 0.0
    %1125 = vmatpush2.msra.mxu0 0.0
    %1126 = vmatprep.subr.mxu0 0.0
    %1127 = vmatpush2.msra.mxu0 0.0
    %1128 = vmatprep.subr.mxu0 0.0
    %1129 = vmatpush2.msra.mxu0 0.0
    %1130 = vmatprep.subr.mxu0 0.0
    %1131 = vmatpush2.msra.mxu0 0.0
    %1132 = vmatprep.subr.mxu0 0.0
    %1133 = vmatpush2.msra.mxu0 0.0
    %1134 = vmatprep.subr.mxu0 0.0
    %1135 = vmatpush2.msra.mxu0 0.0
    %1136 = vmatprep.subr.mxu0 0.0
    %1137 = vmatpush2.msra.mxu0 0.0
    %1138 = vmatprep.subr.mxu0 0.0
    %1139 = vmatpush2.msra.mxu0 0.0
    %1140 = vmatprep.subr.mxu0 0.0
    %1141 = vmatpush2.msra.mxu0 0.0
    %1142 = vmatprep.mubr.f32.mxu0 0.0
    %1143 = vmatmul.mubr.f32.gmra.mxu0 %v1073
    %v1144 = vpop.f32.mrf.mxu0
    %v1145 = vadd.f32 %v1064, %v1144
    %v1146 = vpop.f32.mrf.mxu0
    %1147 = vmatprep.mubr.f32.mxu0 0.0
    %1148 = vmatmul.mubr.f32.gmra.mxu0 %v1076
    %v1149 = vpop.f32.mrf.mxu0
    %v1150 = vadd.f32 %v1069, %v1149
    %v1151 = vpop.f32.mrf.mxu0
    %1152 = vdwg.mxu0
    %v1153 = vlaneseq
    %v1154 = vshrl.u32 %v1153, 7
    %v1155 = vsub.s32 0, %v1154
    %v1156 = vrot.slane %v29, %v1155
    %v1157 = vadd.f32 %v1145, %v1156
    %v1158 = vadd.f32 %v1150, %v1156
    %1159 = vst [vmem:[#allocation5] sm:$0xff] %v1157
    %1160 = vst [vmem:[#allocation5 + $0x8] sm:$0xff] %v1158
    // Predicated region
    $region14: #{tpu_custom_call.1} parent=1 // pred_check
      _
    $region15: #{tpu_custom_call.1} parent=1 // pred_check_branch
      %1162 = sbr.rel (0) target = $region17
    $region16: #{tpu_custom_call.1} parent=1 // pred_region
      %s1164 = ssub.s32 256, 256
      %1165 = vsyncadd [#allocation4], %s1164
      %s1166 = sshll.u32 [#allocation5], 4
      %s1167 = int_to_ptr.vmem [resolvable:$true] %s1166
      %1172 = dma.vmem_to_hbm [thread:$0]  %s1167, 256, %s2, [#allocation4], 128, 128, 8
    $region17: #{tpu_custom_call.1} parent=1 // pred_fallthru
      _
    // Predicated region
    $region18: #{tpu_custom_call.1} parent=1 // pred_check
      _
    $region19: #{tpu_custom_call.1} parent=1 // pred_check_branch
      %1174 = sbr.rel (0) target = $region21
    $region20: #{tpu_custom_call.1} parent=1 // pred_region
      %1175 = dma.done [#allocation4], 256
    $region21: #{tpu_custom_call.1} parent=1 // pred_fallthru
      _
    %1176 = vsyncpa [#allocation3], 1
    %1177 = vsyncpa [#allocation4], 1

</llo_original>
